<compile_context>
chip_gen: v5e
topology: v5e:2x2
jax: 0.10.0
libtpu: 0.0.40
codegen_flags: <defaults>
</compile_context>

<pallas_src>
import jax
import jax.numpy as jnp
from jax import lax
from jax.experimental import pallas as pl
from jax.experimental.pallas import tpu as pltpu


D_IN, D_H1, D_H2, D_OUT = 14, 127, 53, 1
H1P, H2P = 128, 64          # zero-padded hidden extents (clean sublane tiles)


def mlp_kernel(x_ref, w1T_ref, b1_ref, w2T_ref, b2_ref, w3_ref, b3_ref, o_ref):
    # x: (tb, 14) f32 (lane-padded in VMEM); cast to bf16 for the MXU.
    xb = x_ref[...].astype(jnp.bfloat16)
    # Layer 1: W1^T (128, 14) contracted against x's feature axis -> (128, tb).
    # (trans_b-style dot_general; Mosaic handles the operand transpose on-chip.)
    h1 = lax.dot_general(w1T_ref[...], xb,
                         dimension_numbers=(((1,), (1,)), ((), ())),
                         preferred_element_type=jnp.float32)
    # Fused bias + ReLU + bf16 cast (lets the f32 h1 buffer retire before layer 2).
    h1b = jnp.maximum(h1 + b1_ref[...], 0.0).astype(jnp.bfloat16)
    # TODO(synk): nn.Dropout(p=0.34297) is identity in eval mode; training-mode
    # stochastic masking (pltpu.prng_seed/prng_random_bits) is not implemented.
    # Layer 2: (64, 128) @ (128, tb) -> (64, tb), f32 accumulate.
    h2 = jnp.dot(w2T_ref[...], h1b, preferred_element_type=jnp.float32)
    h2 = jnp.maximum(h2 + b2_ref[...], 0.0)
    # Layer 3 (D_out = 1) off the MXU: VPU multiply + sublane (XLU) reduce.
    y = jnp.sum(h2 * w3_ref[...], axis=0, keepdims=True) + b3_ref[...]   # (1, tb)
    o_ref[...] = y                                                       # lane-dense store


def ann_forward(x, params, *, tb=8192):
    """Eval-mode forward. x: (N, 14) float32 -> (N, 1) float32."""
    w1, b1, w2, b2, w3, b3 = params
    N, d_in = x.shape
    assert d_in == D_IN
    assert tb % 128 == 0

    # Clamp tb (multiple of 128 lanes).  For moderate N, shrink so the grid has
    # >= 2 steps (both v7x TensorCores get work); for tiny N use one 128 tile.
    one_tile = max(128, pl.cdiv(N, 128) * 128)
    if one_tile > 128:
        two_tile = max(128, pl.cdiv(pl.cdiv(N, 2), 128) * 128)
        tb = int(min(tb, two_tile))
    else:
        tb = 128

    n_pad = pl.cdiv(N, tb) * tb
    if n_pad != N:
        x = jnp.pad(x, ((0, n_pad - N), (0, 0)))
    x = x.astype(jnp.float32)

    # Wrapper-side weight prep: transpose + bf16 for MXU operands, zero-pad the
    # hidden dims to (128, 64).  Padded rows/cols carry zero weights & biases,
    # so results are identical to the unpadded network.
    w1T = jnp.zeros((H1P, D_IN), jnp.bfloat16).at[:D_H1, :].set(
        w1.T.astype(jnp.bfloat16))                                   # (128, 14)
    b1c = jnp.zeros((H1P, 1), jnp.float32).at[:D_H1, :].set(
        b1.reshape(D_H1, 1).astype(jnp.float32))                     # (128, 1)
    w2T = jnp.zeros((H2P, H1P), jnp.bfloat16).at[:D_H2, :D_H1].set(
        w2.T.astype(jnp.bfloat16))                                   # (64, 128)
    b2c = jnp.zeros((H2P, 1), jnp.float32).at[:D_H2, :].set(
        b2.reshape(D_H2, 1).astype(jnp.float32))                     # (64, 1)
    w3c = jnp.zeros((H2P, 1), jnp.float32).at[:D_H2, :].set(
        w3.reshape(D_H2, 1).astype(jnp.float32))                     # (64, 1)
    b3c = b3.reshape(1, 1).astype(jnp.float32)                       # (1, 1)

    grid = (n_pad // tb,)
    const = lambda shape: pl.BlockSpec(shape, lambda i: (0, 0))

    out = pl.pallas_call(
        mlp_kernel,
        out_shape=jax.ShapeDtypeStruct((1, n_pad), jnp.float32),
        grid_spec=pltpu.PrefetchScalarGridSpec(
            num_scalar_prefetch=0,
            grid=grid,
            in_specs=[
                pl.BlockSpec((tb, D_IN), lambda i: (i, 0)),   # x tile (untransposed)
                const((H1P, D_IN)),                           # W1^T
                const((H1P, 1)),                              # b1
                const((H2P, H1P)),                            # W2^T
                const((H2P, 1)),                              # b2
                const((H2P, 1)),                              # w3 column
                const((1, 1)),                                # b3
            ],
            out_specs=pl.BlockSpec((1, tb), lambda i: (0, i)),
        ),
        compiler_params=pltpu.CompilerParams(
            dimension_semantics=("parallel",),                # megacore on v7x
            vmem_limit_bytes=48 * 1024 * 1024,                # < 64 MiB v7x physical
        ),
    )(x, w1T, b1c, w2T, b2c, w3c, b3c)

    return out[0, :N].reshape(N, 1)


def init_params(key):
    """Deterministic init mimicking PyTorch nn.Linear default (U[-1/sqrt(fan_in), 1/sqrt(fan_in)])."""
    def linear(key, fan_in, fan_out):
        kw, kb = jax.random.split(key)
        bound = 1.0 / jnp.sqrt(jnp.float32(fan_in))
        w = jax.random.uniform(kw, (fan_in, fan_out), jnp.float32, -bound, bound)
        b = jax.random.uniform(kb, (1, fan_out), jnp.float32, -bound, bound)
        return w, b

    k1, k2, k3 = jax.random.split(key, 3)
    w1, b1 = linear(k1, D_IN, D_H1)
    w2, b2 = linear(k2, D_H1, D_H2)
    w3, b3 = linear(k3, D_H2, D_OUT)
    return (w1, b1, w2, b2, w3, b3)


def _reference(x, params):
    """Plain-JAX reference matching the kernel's bf16-operand / f32-accumulate math."""
    w1, b1, w2, b2, w3, b3 = params
    up = lambda a: a.astype(jnp.bfloat16).astype(jnp.float32)
    h1 = jnp.maximum(up(x) @ up(w1) + b1, 0.0)
    h2 = jnp.maximum(up(h1) @ up(w2) + b2, 0.0)
    return h2 @ w3 + b3


if __name__ == "__main__":
    key = jax.random.PRNGKey(0)
    kx, kp = jax.random.split(key)
    params = init_params(kp)

    # Small batch (exercises the tb clamp + zero-padding path, grid = 1).
    N = 8
    x = jax.random.normal(kx, (N, D_IN), jnp.float32)
    out = jax.block_until_ready(ann_forward(x, params))
    ref = _reference(x, params)
    assert out.shape == (N, 1)
    assert jnp.allclose(out, ref, atol=1e-3, rtol=1e-3)

    # Ragged batch (N not a multiple of 128) -> tb clamp gives a 2-step grid.
    N2 = 300
    x2 = jax.random.normal(jax.random.PRNGKey(1), (N2, D_IN), jnp.float32)
    out2 = jax.block_until_ready(ann_forward(x2, params))
    ref2 = _reference(x2, params)
    assert out2.shape == (N2, 1)
    assert jnp.allclose(out2, ref2, atol=1e-3, rtol=1e-3)

    print("KERNEL_OK")
</pallas_src>

<mosaic_0001>
module attributes {stable_mosaic.version = 11 : i64} {
  func.func @mlp_kernel(%arg0: i32, %arg1: memref<128x14xf32, #tpu.memory_space<vmem>>, %arg2: memref<128x14xbf16, #tpu.memory_space<vmem>>, %arg3: memref<128x1xf32, #tpu.memory_space<vmem>>, %arg4: memref<64x128xbf16, #tpu.memory_space<vmem>>, %arg5: memref<64x1xf32, #tpu.memory_space<vmem>>, %arg6: memref<64x1xf32, #tpu.memory_space<vmem>>, %arg7: memref<1x1xf32, #tpu.memory_space<vmem>>, %arg8: memref<1x128xf32, #tpu.memory_space<vmem>>) attributes {dimension_semantics = [#tpu.dimension_semantics<parallel>], iteration_bounds = array<i64: 1>, scalar_prefetch = 0 : i64, scratch_operands = 0 : i64, tpu.core_type = #tpu.core_type<tc>, window_params = [{transform_indices = @transform_0, window_bounds = array<i64: 128, 14>}, {pipeline_mode = #tpu.pipeline_mode<synchronous>, transform_indices = @transform_1, window_bounds = array<i64: 128, 14>}, {pipeline_mode = #tpu.pipeline_mode<synchronous>, transform_indices = @transform_2, window_bounds = array<i64: 128, 1>}, {pipeline_mode = #tpu.pipeline_mode<synchronous>, transform_indices = @transform_3, window_bounds = array<i64: 64, 128>}, {pipeline_mode = #tpu.pipeline_mode<synchronous>, transform_indices = @transform_4, window_bounds = array<i64: 64, 1>}, {pipeline_mode = #tpu.pipeline_mode<synchronous>, transform_indices = @transform_5, window_bounds = array<i64: 64, 1>}, {pipeline_mode = #tpu.pipeline_mode<synchronous>, transform_indices = @transform_6, window_bounds = array<i64: 1, 1>}, {transform_indices = @transform_7, window_bounds = array<i64: 1, 128>}]} {
    %c0 = arith.constant 0 : index
    %c0_0 = arith.constant 0 : index
    %0 = vector.load %arg1[%c0, %c0_0] : memref<128x14xf32, #tpu.memory_space<vmem>>, vector<128x14xf32>
    %1 = arith.truncf %0 : vector<128x14xf32> to vector<128x14xbf16>
    %c0_1 = arith.constant 0 : index
    %c0_2 = arith.constant 0 : index
    %2 = vector.load %arg2[%c0_1, %c0_2] : memref<128x14xbf16, #tpu.memory_space<vmem>>, vector<128x14xbf16>
    %cst = arith.constant dense<0.000000e+00> : vector<128x128xf32>
    %3 = tpu.matmul %2, %1, %cst {dimension_numbers = #tpu.dot_dimension_numbers<[1], [1], [0], [0], [0, 0, 1, 0], [], []>} : vector<128x14xbf16>, vector<128x14xbf16>, vector<128x128xf32> -> vector<128x128xf32>
    %c0_3 = arith.constant 0 : index
    %c0_4 = arith.constant 0 : index
    %4 = vector.load %arg3[%c0_3, %c0_4] : memref<128x1xf32, #tpu.memory_space<vmem>>, vector<128x1xf32>
    %5 = vector.broadcast %4 : vector<128x1xf32> to vector<128x128xf32>
    %6 = arith.addf %3, %5 : vector<128x128xf32>
    %cst_5 = arith.constant 0.000000e+00 : f32
    %7 = vector.broadcast %cst_5 : f32 to vector<128x128xf32>
    %8 = arith.maximumf %6, %7 : vector<128x128xf32>
    %9 = arith.truncf %8 : vector<128x128xf32> to vector<128x128xbf16>
    %c0_6 = arith.constant 0 : index
    %c0_7 = arith.constant 0 : index
    %10 = vector.load %arg4[%c0_6, %c0_7] : memref<64x128xbf16, #tpu.memory_space<vmem>>, vector<64x128xbf16>
    %cst_8 = arith.constant dense<0.000000e+00> : vector<64x128xf32>
    %11 = tpu.matmul %10, %9, %cst_8 {dimension_numbers = #tpu.dot_dimension_numbers<[1], [0], [0], [1], [0, 0, 1, 1], [], []>} : vector<64x128xbf16>, vector<128x128xbf16>, vector<64x128xf32> -> vector<64x128xf32>
    %c0_9 = arith.constant 0 : index
    %c0_10 = arith.constant 0 : index
    %12 = vector.load %arg5[%c0_9, %c0_10] : memref<64x1xf32, #tpu.memory_space<vmem>>, vector<64x1xf32>
    %13 = vector.broadcast %12 : vector<64x1xf32> to vector<64x128xf32>
    %14 = arith.addf %11, %13 : vector<64x128xf32>
    %cst_11 = arith.constant 0.000000e+00 : f32
    %15 = vector.broadcast %cst_11 : f32 to vector<64x128xf32>
    %16 = arith.maximumf %14, %15 : vector<64x128xf32>
    %c0_12 = arith.constant 0 : index
    %c0_13 = arith.constant 0 : index
    %17 = vector.load %arg6[%c0_12, %c0_13] : memref<64x1xf32, #tpu.memory_space<vmem>>, vector<64x1xf32>
    %18 = vector.broadcast %17 : vector<64x1xf32> to vector<64x128xf32>
    %19 = arith.mulf %16, %18 : vector<64x128xf32>
    %cst_14 = arith.constant dense<0.000000e+00> : vector<128xf32>
    %20 = vector.multi_reduction <add>, %19, %cst_14 [0] : vector<64x128xf32> to vector<128xf32>
    %21 = vector.shape_cast %20 : vector<128xf32> to vector<1x128xf32>
    %c0_15 = arith.constant 0 : index
    %c0_16 = arith.constant 0 : index
    %22 = vector.load %arg7[%c0_15, %c0_16] : memref<1x1xf32, #tpu.memory_space<vmem>>, vector<1x1xf32>
    %23 = vector.broadcast %22 : vector<1x1xf32> to vector<1x128xf32>
    %24 = arith.addf %21, %23 : vector<1x128xf32>
    %c0_17 = arith.constant 0 : index
    %c0_18 = arith.constant 0 : index
    %25 = vector.load %arg8[%c0_17, %c0_18] : memref<1x128xf32, #tpu.memory_space<vmem>>, vector<1x128xf32>
    tpu.vector_store %arg8[%c0_17, %c0_18], %24 {strides = array<i32>} : memref<1x128xf32, #tpu.memory_space<vmem>>, vector<1x128xf32>,
    return
  }
  func.func @transform_0(%arg0: i32) -> (i32, i32) {
    %c0_i32 = arith.constant 0 : i32
    %c0_i32_0 = arith.constant 0 : i32
    return %arg0, %c0_i32 : i32, i32
  }
  func.func @transform_1(%arg0: i32) -> (i32, i32) {
    %c0_i32 = arith.constant 0 : i32
    %c0_i32_0 = arith.constant 0 : i32
    %c0_i32_1 = arith.constant 0 : i32
    return %c0_i32, %c0_i32_0 : i32, i32
  }
  func.func @transform_2(%arg0: i32) -> (i32, i32) {
    %c0_i32 = arith.constant 0 : i32
    %c0_i32_0 = arith.constant 0 : i32
    %c0_i32_1 = arith.constant 0 : i32
    return %c0_i32, %c0_i32_0 : i32, i32
  }
  func.func @transform_3(%arg0: i32) -> (i32, i32) {
    %c0_i32 = arith.constant 0 : i32
    %c0_i32_0 = arith.constant 0 : i32
    %c0_i32_1 = arith.constant 0 : i32
    return %c0_i32, %c0_i32_0 : i32, i32
  }
  func.func @transform_4(%arg0: i32) -> (i32, i32) {
    %c0_i32 = arith.constant 0 : i32
    %c0_i32_0 = arith.constant 0 : i32
    %c0_i32_1 = arith.constant 0 : i32
    return %c0_i32, %c0_i32_0 : i32, i32
  }
  func.func @transform_5(%arg0: i32) -> (i32, i32) {
    %c0_i32 = arith.constant 0 : i32
    %c0_i32_0 = arith.constant 0 : i32
    %c0_i32_1 = arith.constant 0 : i32
    return %c0_i32, %c0_i32_0 : i32, i32
  }
  func.func @transform_6(%arg0: i32) -> (i32, i32) {
    %c0_i32 = arith.constant 0 : i32
    %c0_i32_0 = arith.constant 0 : i32
    %c0_i32_1 = arith.constant 0 : i32
    return %c0_i32, %c0_i32_0 : i32, i32
  }
  func.func @transform_7(%arg0: i32) -> (i32, i32) {
    %c0_i32 = arith.constant 0 : i32
    %c0_i32_0 = arith.constant 0 : i32
    return %c0_i32, %arg0 : i32, i32
  }
}

</mosaic_0001>

<llo_original>
// kernel: tpu_custom_call.1
$region0: #{tpu_custom_call.1}
  #allocation0 [shape = 'u32[]', space=smem, size = 0x4, offset = 0x4, fixed_abs, tag = 'smem constant byte address 0x4 - core index']
  #allocation1 [shape = 'u32[72,128]{1,0:T(1,128)}', space=vmem, size = 0x9000, scoped, tag = 'internal scratch']
  #allocation2 [shape = 'f32[1,1]{1,0:T(1,128)S(1)}', space=vmem, size = 0x200, scoped, tag = 'scoped memory for tpu_custom_call.1']
  %s0 = inlined_call_operand.vmem [shape: f32[128,14], index: 0, kind: input, shape index: {}]
  %s1 = inlined_call_operand.vmem [shape: bf16[128,14], index: 1, kind: input, shape index: {}]
  %s2 = inlined_call_operand.vmem [shape: f32[128,1], index: 2, kind: input, shape index: {}]
  %s3 = inlined_call_operand.vmem [shape: bf16[64,128], index: 3, kind: input, shape index: {}]
  %s4 = inlined_call_operand.vmem [shape: f32[64,1], index: 4, kind: input, shape index: {}]
  %s5 = inlined_call_operand.vmem [shape: f32[64,1], index: 5, kind: input, shape index: {}]
  %s6 = inlined_call_operand.<no memory space> [shape: f32[1,1], index: 6, kind: input, shape index: {}]
  %s7 = inlined_call_operand.hbm [shape: f32[1,128], index: 7, kind: output, shape index: {}]
  %s8 = sld [smem:[#allocation0]]
  $region38: #{tpu_custom_call.1} parent=0
    _
  %s10 = ssub.s32 1, %s8
  %s11 = scalar_select 0, %s10, %s8
  %v12 = vstv %s6
  %13 = vst [vmem:[#allocation2] sm:$0x1] %v12
  $region1: #{tpu_custom_call.1} parent=0
    #allocation3 [shape = 'u8[512]{0}', space=vmem, size = 0x400, scoped, tag = 'output window, operand 0, single buffered']
    #allocation4 [shape = 's32[1]{0}', space=sflag, size = 0x4, scoped, tag = 'scoped memory for tpu_custom_call.1']
    %14 = vsyncpa [#allocation4], 0
    // Predicated region
    $region2: #{tpu_custom_call.1} parent=1 // pred_check
      _
    $region3: #{tpu_custom_call.1} parent=1 // pred_check_branch
      %16 = sbr.rel (0) target = $region5
    $region4: #{tpu_custom_call.1} parent=1 // pred_region
      _
    $region5: #{tpu_custom_call.1} parent=1 // pred_fallthru
      _
    // Predicated region
    $region6: #{tpu_custom_call.1} parent=1 // pred_check
      _
    $region7: #{tpu_custom_call.1} parent=1 // pred_check_branch
      %18 = sbr.rel (0) target = $region9
    $region8: #{tpu_custom_call.1} parent=1 // pred_region
      _
    $region9: #{tpu_custom_call.1} parent=1 // pred_fallthru
      _
    // Predicated region
    $region10: #{tpu_custom_call.1} parent=1 // pred_check
      _
    $region11: #{tpu_custom_call.1} parent=1 // pred_check_branch
      %20 = sbr.rel (0) target = $region13
    $region12: #{tpu_custom_call.1} parent=1 // pred_region
      _
    $region13: #{tpu_custom_call.1} parent=1 // pred_fallthru
      _
    // Predicated region
    $region14: #{tpu_custom_call.1} parent=1 // pred_check
      _
    $region15: #{tpu_custom_call.1} parent=1 // pred_check_branch
      %22 = sbr.rel (0) target = $region17
    $region16: #{tpu_custom_call.1} parent=1 // pred_region
      _
    $region17: #{tpu_custom_call.1} parent=1 // pred_fallthru
      _
    // Predicated region
    $region18: #{tpu_custom_call.1} parent=1 // pred_check
      _
    $region19: #{tpu_custom_call.1} parent=1 // pred_check_branch
      %24 = sbr.rel (0) target = $region21
    $region20: #{tpu_custom_call.1} parent=1 // pred_region
      _
    $region21: #{tpu_custom_call.1} parent=1 // pred_fallthru
      _
    // Predicated region
    $region22: #{tpu_custom_call.1} parent=1 // pred_check
      _
    $region23: #{tpu_custom_call.1} parent=1 // pred_check_branch
      %26 = sbr.rel (0) target = $region25
    $region24: #{tpu_custom_call.1} parent=1 // pred_region
      _
    $region25: #{tpu_custom_call.1} parent=1 // pred_fallthru
      _
    // Predicated region
    $region26: #{tpu_custom_call.1} parent=1 // pred_check
      _
    $region27: #{tpu_custom_call.1} parent=1 // pred_check_branch
      %28 = sbr.rel (0) target = $region29
    $region28: #{tpu_custom_call.1} parent=1 // pred_region
      _
    $region29: #{tpu_custom_call.1} parent=1 // pred_fallthru
      _
    %v29 = vld [vmem:[%s0] sm:$0xff]
    %v30 = vld [vmem:[%s0 + $0x8] sm:$0xff]
    %v31 = vld [vmem:[%s0 + $0x10] sm:$0xff]
    %v32 = vld [vmem:[%s0 + $0x18] sm:$0xff]
    %v33 = vld [vmem:[%s0 + $0x20] sm:$0xff]
    %v34 = vld [vmem:[%s0 + $0x28] sm:$0xff]
    %v35 = vld [vmem:[%s0 + $0x30] sm:$0xff]
    %v36 = vld [vmem:[%s0 + $0x38] sm:$0xff]
    %v37 = vld [vmem:[%s0 + $0x40] sm:$0xff]
    %v38 = vld [vmem:[%s0 + $0x48] sm:$0xff]
    %v39 = vld [vmem:[%s0 + $0x50] sm:$0xff]
    %v40 = vld [vmem:[%s0 + $0x58] sm:$0xff]
    %v41 = vld [vmem:[%s0 + $0x60] sm:$0xff]
    %v42 = vld [vmem:[%s0 + $0x68] sm:$0xff]
    %v43 = vld [vmem:[%s0 + $0x70] sm:$0xff]
    %v44 = vld [vmem:[%s0 + $0x78] sm:$0xff]
    %v45 = vpack.c.bf16 %v30, %v29
    %v46 = vpack.c.bf16 %v32, %v31
    %v47 = vpack.c.bf16 %v34, %v33
    %v48 = vpack.c.bf16 %v36, %v35
    %v49 = vpack.c.bf16 %v38, %v37
    %v50 = vpack.c.bf16 %v40, %v39
    %v51 = vpack.c.bf16 %v42, %v41
    %v52 = vpack.c.bf16 %v44, %v43
    %v53 = vld [vmem:[%s1] sm:$0xf]
    %v54 = vld [vmem:[%s1 + $0x4] sm:$0xf]
    %v55 = vld [vmem:[%s1 + $0x8] sm:$0xf]
    %v56 = vld [vmem:[%s1 + $0xc] sm:$0xf]
    %v57 = vld [vmem:[%s1 + $0x10] sm:$0xf]
    %v58 = vld [vmem:[%s1 + $0x14] sm:$0xf]
    %v59 = vld [vmem:[%s1 + $0x18] sm:$0xf]
    %v60 = vld [vmem:[%s1 + $0x1c] sm:$0xf]
    %v61 = vld [vmem:[%s1 + $0x20] sm:$0xf]
    %v62 = vld [vmem:[%s1 + $0x24] sm:$0xf]
    %v63 = vld [vmem:[%s1 + $0x28] sm:$0xf]
    %v64 = vld [vmem:[%s1 + $0x2c] sm:$0xf]
    %v65 = vld [vmem:[%s1 + $0x30] sm:$0xf]
    %v66 = vld [vmem:[%s1 + $0x34] sm:$0xf]
    %v67 = vld [vmem:[%s1 + $0x38] sm:$0xf]
    %v68 = vld [vmem:[%s1 + $0x3c] sm:$0xf]
    %v69 = vld [vmem:[%s2] sm:$0xff]
    %v70 = vld [vmem:[%s2 + $0x8] sm:$0xff]
    %v71 = vld [vmem:[%s2 + $0x10] sm:$0xff]
    %v72 = vld [vmem:[%s2 + $0x18] sm:$0xff]
    %v73 = vld [vmem:[%s2 + $0x20] sm:$0xff]
    %v74 = vld [vmem:[%s2 + $0x28] sm:$0xff]
    %v75 = vld [vmem:[%s2 + $0x30] sm:$0xff]
    %v76 = vld [vmem:[%s2 + $0x38] sm:$0xff]
    %v77 = vld [vmem:[%s2 + $0x40] sm:$0xff]
    %v78 = vld [vmem:[%s2 + $0x48] sm:$0xff]
    %v79 = vld [vmem:[%s2 + $0x50] sm:$0xff]
    %v80 = vld [vmem:[%s2 + $0x58] sm:$0xff]
    %v81 = vld [vmem:[%s2 + $0x60] sm:$0xff]
    %v82 = vld [vmem:[%s2 + $0x68] sm:$0xff]
    %v83 = vld [vmem:[%s2 + $0x70] sm:$0xff]
    %v84 = vld [vmem:[%s2 + $0x78] sm:$0xff]
    %86 = vset.pattern.permute.xlu0 0
    %87 = vperm.xlu0 %86, %v69
    %v88 = vpop.permute.xlu0 %87
    %91 = vset.pattern.permute.xlu0 0
    %92 = vperm.xlu0 %91, %v70
    %v93 = vpop.permute.xlu0 %92
    %96 = vset.pattern.permute.xlu0 0
    %97 = vperm.xlu0 %96, %v71
    %v98 = vpop.permute.xlu0 %97
    %101 = vset.pattern.permute.xlu0 0
    %102 = vperm.xlu0 %101, %v72
    %v103 = vpop.permute.xlu0 %102
    %106 = vset.pattern.permute.xlu0 0
    %107 = vperm.xlu0 %106, %v73
    %v108 = vpop.permute.xlu0 %107
    %111 = vset.pattern.permute.xlu0 0
    %112 = vperm.xlu0 %111, %v74
    %v113 = vpop.permute.xlu0 %112
    %116 = vset.pattern.permute.xlu0 0
    %117 = vperm.xlu0 %116, %v75
    %v118 = vpop.permute.xlu0 %117
    %121 = vset.pattern.permute.xlu0 0
    %122 = vperm.xlu0 %121, %v76
    %v123 = vpop.permute.xlu0 %122
    %126 = vset.pattern.permute.xlu0 0
    %127 = vperm.xlu0 %126, %v77
    %v128 = vpop.permute.xlu0 %127
    %131 = vset.pattern.permute.xlu0 0
    %132 = vperm.xlu0 %131, %v78
    %v133 = vpop.permute.xlu0 %132
    %136 = vset.pattern.permute.xlu0 0
    %137 = vperm.xlu0 %136, %v79
    %v138 = vpop.permute.xlu0 %137
    %141 = vset.pattern.permute.xlu0 0
    %142 = vperm.xlu0 %141, %v80
    %v143 = vpop.permute.xlu0 %142
    %146 = vset.pattern.permute.xlu0 0
    %147 = vperm.xlu0 %146, %v81
    %v148 = vpop.permute.xlu0 %147
    %151 = vset.pattern.permute.xlu0 0
    %152 = vperm.xlu0 %151, %v82
    %v153 = vpop.permute.xlu0 %152
    %156 = vset.pattern.permute.xlu0 0
    %157 = vperm.xlu0 %156, %v83
    %v158 = vpop.permute.xlu0 %157
    %161 = vset.pattern.permute.xlu0 0
    %162 = vperm.xlu0 %161, %v84
    %v163 = vpop.permute.xlu0 %162
    %v181 = vunpack.c.l.b16 %v53
    %v182 = vunpack.c.l.b16 %v54
    %v183 = vunpack.c.l.b16 %v55
    %v184 = vunpack.c.l.b16 %v56
    %v185 = vunpack.c.l.b16 %v57
    %v186 = vunpack.c.l.b16 %v58
    %v187 = vunpack.c.l.b16 %v59
    %v188 = vunpack.c.l.b16 %v60
    %v189 = vunpack.c.l.b16 %v61
    %v190 = vunpack.c.l.b16 %v62
    %v191 = vunpack.c.l.b16 %v63
    %v192 = vunpack.c.l.b16 %v64
    %v193 = vunpack.c.l.b16 %v65
    %v194 = vunpack.c.l.b16 %v66
    %v195 = vunpack.c.l.b16 %v67
    %v196 = vunpack.c.l.b16 %v68
    %v197 = vpack.c.b16 %v182, %v181
    %v198 = vpack.c.b16 %v184, %v183
    %v199 = vpack.c.b16 %v186, %v185
    %v200 = vpack.c.b16 %v188, %v187
    %v201 = vpack.c.b16 %v190, %v189
    %v202 = vpack.c.b16 %v192, %v191
    %v203 = vpack.c.b16 %v194, %v193
    %v204 = vpack.c.b16 %v196, %v195
    %vm205 = vcmask 113664
    %v207 = vsel %vm205, %v197, 0
    %v210 = vsel %vm205, %v198, 0
    %v213 = vsel %vm205, %v199, 0
    %v216 = vsel %vm205, %v200, 0
    %v219 = vsel %vm205, %v201, 0
    %v222 = vsel %vm205, %v202, 0
    %v225 = vsel %vm205, %v203, 0
    %v228 = vsel %vm205, %v204, 0
    %v231 = vsel %vm205, %v45, 0
    %v234 = vsel %vm205, %v46, 0
    %v237 = vsel %vm205, %v47, 0
    %v240 = vsel %vm205, %v48, 0
    %v243 = vsel %vm205, %v49, 0
    %v246 = vsel %vm205, %v50, 0
    %v249 = vsel %vm205, %v51, 0
    %v252 = vsel %vm205, %v52, 0
    %254 = vmatpush.bf16.xpose.msra.mxu0 %v252
    %255 = vmatpush.bf16.xpose.msra.mxu0 %v249
    %256 = vmatpush.bf16.xpose.msra.mxu0 %v246
    %257 = vmatpush.bf16.xpose.msra.mxu0 %v243
    %258 = vmatpush.bf16.xpose.msra.mxu0 %v240
    %259 = vmatpush.bf16.xpose.msra.mxu0 %v237
    %260 = vmatpush.bf16.xpose.msra.mxu0 %v234
    %261 = vmatpush.bf16.xpose.msra.mxu0 %v231
    %262 = vmatmul.bf16.gmra.mxu0 %v207
    %v263 = vpop.f32.mrf.mxu0
    %v264 = vadd.f32 %v88, %v263
    %v265 = vpop.f32.mrf.mxu0
    %v266 = vadd.f32 %v93, %v265
    %267 = vmatmul.bf16.gmra.mxu0 %v210
    %v268 = vpop.f32.mrf.mxu0
    %v269 = vadd.f32 %v98, %v268
    %v270 = vpop.f32.mrf.mxu0
    %v271 = vadd.f32 %v103, %v270
    %272 = vmatmul.bf16.gmra.mxu0 %v213
    %v273 = vpop.f32.mrf.mxu0
    %v274 = vadd.f32 %v108, %v273
    %v275 = vpop.f32.mrf.mxu0
    %v276 = vadd.f32 %v113, %v275
    %277 = vmatmul.bf16.gmra.mxu0 %v216
    %v278 = vpop.f32.mrf.mxu0
    %v279 = vadd.f32 %v118, %v278
    %v280 = vpop.f32.mrf.mxu0
    %v281 = vadd.f32 %v123, %v280
    %282 = vmatmul.bf16.gmra.mxu0 %v219
    %v283 = vpop.f32.mrf.mxu0
    %v284 = vadd.f32 %v128, %v283
    %v285 = vpop.f32.mrf.mxu0
    %v286 = vadd.f32 %v133, %v285
    %287 = vmatmul.bf16.gmra.mxu0 %v222
    %v288 = vpop.f32.mrf.mxu0
    %v289 = vadd.f32 %v138, %v288
    %v290 = vpop.f32.mrf.mxu0
    %v291 = vadd.f32 %v143, %v290
    %292 = vmatmul.bf16.gmra.mxu0 %v225
    %v293 = vpop.f32.mrf.mxu0
    %v294 = vadd.f32 %v148, %v293
    %v295 = vpop.f32.mrf.mxu0
    %v296 = vadd.f32 %v153, %v295
    %297 = vmatmul.bf16.gmra.mxu0 %v228
    %v298 = vpop.f32.mrf.mxu0
    %v299 = vadd.f32 %v158, %v298
    %v300 = vpop.f32.mrf.mxu0
    %v301 = vadd.f32 %v163, %v300
    %302 = vdwg.mxu0
    %v303 = vmax.f32 %v264, 0.0
    %v304 = vmax.f32 %v266, 0.0
    %v305 = vmax.f32 %v269, 0.0
    %v306 = vmax.f32 %v271, 0.0
    %v307 = vmax.f32 %v274, 0.0
    %v308 = vmax.f32 %v276, 0.0
    %v309 = vmax.f32 %v279, 0.0
    %v310 = vmax.f32 %v281, 0.0
    %v311 = vmax.f32 %v284, 0.0
    %v312 = vmax.f32 %v286, 0.0
    %v313 = vmax.f32 %v289, 0.0
    %v314 = vmax.f32 %v291, 0.0
    %v315 = vmax.f32 %v294, 0.0
    %v316 = vmax.f32 %v296, 0.0
    %v317 = vmax.f32 %v299, 0.0
    %v318 = vmax.f32 %v301, 0.0
    %v319 = vpack.c.bf16 %v304, %v303
    %v320 = vpack.c.bf16 %v306, %v305
    %v321 = vpack.c.bf16 %v308, %v307
    %v322 = vpack.c.bf16 %v310, %v309
    %v323 = vpack.c.bf16 %v312, %v311
    %v324 = vpack.c.bf16 %v314, %v313
    %v325 = vpack.c.bf16 %v316, %v315
    %v326 = vpack.c.bf16 %v318, %v317
    %v327 = vld [vmem:[%s3] sm:$0xf]
    %v328 = vld [vmem:[%s3 + $0x4] sm:$0xf]
    %v329 = vld [vmem:[%s3 + $0x8] sm:$0xf]
    %v330 = vld [vmem:[%s3 + $0xc] sm:$0xf]
    %v331 = vld [vmem:[%s3 + $0x10] sm:$0xf]
    %v332 = vld [vmem:[%s3 + $0x14] sm:$0xf]
    %v333 = vld [vmem:[%s3 + $0x18] sm:$0xf]
    %v334 = vld [vmem:[%s3 + $0x1c] sm:$0xf]
    %v335 = vld [vmem:[%s4] sm:$0xff]
    %v336 = vld [vmem:[%s4 + $0x8] sm:$0xff]
    %v337 = vld [vmem:[%s4 + $0x10] sm:$0xff]
    %v338 = vld [vmem:[%s4 + $0x18] sm:$0xff]
    %v339 = vld [vmem:[%s4 + $0x20] sm:$0xff]
    %v340 = vld [vmem:[%s4 + $0x28] sm:$0xff]
    %v341 = vld [vmem:[%s4 + $0x30] sm:$0xff]
    %v342 = vld [vmem:[%s4 + $0x38] sm:$0xff]
    %344 = vset.pattern.permute.xlu0 0
    %345 = vperm.xlu0 %344, %v335
    %v346 = vpop.permute.xlu0 %345
    %349 = vset.pattern.permute.xlu0 0
    %350 = vperm.xlu0 %349, %v336
    %v351 = vpop.permute.xlu0 %350
    %354 = vset.pattern.permute.xlu0 0
    %355 = vperm.xlu0 %354, %v337
    %v356 = vpop.permute.xlu0 %355
    %359 = vset.pattern.permute.xlu0 0
    %360 = vperm.xlu0 %359, %v338
    %v361 = vpop.permute.xlu0 %360
    %364 = vset.pattern.permute.xlu0 0
    %365 = vperm.xlu0 %364, %v339
    %v366 = vpop.permute.xlu0 %365
    %369 = vset.pattern.permute.xlu0 0
    %370 = vperm.xlu0 %369, %v340
    %v371 = vpop.permute.xlu0 %370
    %374 = vset.pattern.permute.xlu0 0
    %375 = vperm.xlu0 %374, %v341
    %v376 = vpop.permute.xlu0 %375
    %379 = vset.pattern.permute.xlu0 0
    %380 = vperm.xlu0 %379, %v342
    %v381 = vpop.permute.xlu0 %380
    %v391 = vunpack.c.l.b16 %v327
    %v392 = vunpack.c.l.b16 %v328
    %v393 = vunpack.c.l.b16 %v329
    %v394 = vunpack.c.l.b16 %v330
    %v395 = vunpack.c.l.b16 %v331
    %v396 = vunpack.c.l.b16 %v332
    %v397 = vunpack.c.l.b16 %v333
    %v398 = vunpack.c.l.b16 %v334
    %v399 = vpack.c.b16 %v392, %v391
    %v400 = vpack.c.b16 %v394, %v393
    %v401 = vpack.c.b16 %v396, %v395
    %v402 = vpack.c.b16 %v398, %v397
    %407 = vmatpush.bf16.msra.mxu0 %v326
    %408 = vmatpush.bf16.msra.mxu0 %v325
    %409 = vmatpush.bf16.msra.mxu0 %v324
    %410 = vmatpush.bf16.msra.mxu0 %v323
    %411 = vmatpush.bf16.msra.mxu0 %v322
    %412 = vmatpush.bf16.msra.mxu0 %v321
    %413 = vmatpush.bf16.msra.mxu0 %v320
    %414 = vmatpush.bf16.msra.mxu0 %v319
    %415 = vmatmul.bf16.gmra.mxu0 %v399
    %v416 = vpop.f32.mrf.mxu0
    %v417 = vadd.f32 %v346, %v416
    %v418 = vpop.f32.mrf.mxu0
    %v419 = vadd.f32 %v351, %v418
    %420 = vmatmul.bf16.gmra.mxu0 %v400
    %v421 = vpop.f32.mrf.mxu0
    %v422 = vadd.f32 %v356, %v421
    %v423 = vpop.f32.mrf.mxu0
    %v424 = vadd.f32 %v361, %v423
    %425 = vmatmul.bf16.gmra.mxu0 %v401
    %v426 = vpop.f32.mrf.mxu0
    %v427 = vadd.f32 %v366, %v426
    %v428 = vpop.f32.mrf.mxu0
    %v429 = vadd.f32 %v371, %v428
    %430 = vmatmul.bf16.gmra.mxu0 %v402
    %v431 = vpop.f32.mrf.mxu0
    %v432 = vadd.f32 %v376, %v431
    %v433 = vpop.f32.mrf.mxu0
    %v434 = vadd.f32 %v381, %v433
    %435 = vdwg.mxu0
    %v436 = vmax.f32 %v417, 0.0
    %v437 = vmax.f32 %v419, 0.0
    %v438 = vmax.f32 %v422, 0.0
    %v439 = vmax.f32 %v424, 0.0
    %v440 = vmax.f32 %v427, 0.0
    %v441 = vmax.f32 %v429, 0.0
    %v442 = vmax.f32 %v432, 0.0
    %v443 = vmax.f32 %v434, 0.0
    %v444 = vld [vmem:[%s5] sm:$0xff]
    %v445 = vld [vmem:[%s5 + $0x8] sm:$0xff]
    %v446 = vld [vmem:[%s5 + $0x10] sm:$0xff]
    %v447 = vld [vmem:[%s5 + $0x18] sm:$0xff]
    %v448 = vld [vmem:[%s5 + $0x20] sm:$0xff]
    %v449 = vld [vmem:[%s5 + $0x28] sm:$0xff]
    %v450 = vld [vmem:[%s5 + $0x30] sm:$0xff]
    %v451 = vld [vmem:[%s5 + $0x38] sm:$0xff]
    %453 = vset.pattern.permute.xlu0 0
    %454 = vperm.xlu0 %453, %v444
    %v455 = vpop.permute.xlu0 %454
    %458 = vset.pattern.permute.xlu0 0
    %459 = vperm.xlu0 %458, %v445
    %v460 = vpop.permute.xlu0 %459
    %463 = vset.pattern.permute.xlu0 0
    %464 = vperm.xlu0 %463, %v446
    %v465 = vpop.permute.xlu0 %464
    %468 = vset.pattern.permute.xlu0 0
    %469 = vperm.xlu0 %468, %v447
    %v470 = vpop.permute.xlu0 %469
    %473 = vset.pattern.permute.xlu0 0
    %474 = vperm.xlu0 %473, %v448
    %v475 = vpop.permute.xlu0 %474
    %478 = vset.pattern.permute.xlu0 0
    %479 = vperm.xlu0 %478, %v449
    %v480 = vpop.permute.xlu0 %479
    %483 = vset.pattern.permute.xlu0 0
    %484 = vperm.xlu0 %483, %v450
    %v485 = vpop.permute.xlu0 %484
    %488 = vset.pattern.permute.xlu0 0
    %489 = vperm.xlu0 %488, %v451
    %v490 = vpop.permute.xlu0 %489
    %v492 = vmul.f32 %v436, %v455
    %v493 = vmul.f32 %v437, %v460
    %v494 = vmul.f32 %v438, %v465
    %v495 = vmul.f32 %v439, %v470
    %v496 = vmul.f32 %v440, %v475
    %v497 = vmul.f32 %v441, %v480
    %v498 = vmul.f32 %v442, %v485
    %v499 = vmul.f32 %v443, %v490
    %v500 = vadd.f32 %v492, %v493
    %v501 = vadd.f32 %v500, %v494
    %v502 = vadd.f32 %v501, %v495
    %v503 = vadd.f32 %v502, %v496
    %v504 = vadd.f32 %v503, %v497
    %v505 = vadd.f32 %v504, %v498
    %v506 = vadd.f32 %v505, %v499
    %v507 = vrot.slane %v506, 4
    %v508 = vadd.f32 %v506, %v507
    %v509 = vrot.slane %v508, 2
    %v510 = vadd.f32 %v508, %v509
    %v511 = vrot.slane %v510, 1
    %v512 = vadd.f32 %v510, %v511
    %v513 = vld [vmem:[#allocation2] sm:$0x1]
    %515 = vset.pattern.permute.xlu0 0
    %516 = vperm.xlu0 %515, %v513
    %v517 = vpop.permute.xlu0 %516
    %v519 = vperm.slane %v517, 0
    %v520 = vadd.f32 %v512, %v519
    %521 = vst [vmem:[#allocation3] sm:$0x1] %v520
    // Predicated region
    $region30: #{tpu_custom_call.1} parent=1 // pred_check
      _
    $region31: #{tpu_custom_call.1} parent=1 // pred_check_branch
      %523 = sbr.rel (0) target = $region33
    $region32: #{tpu_custom_call.1} parent=1 // pred_region
      %525 = vsyncadd [#allocation4], 0
      %s527 = sshll.u32 [#allocation3], 4
      %s528 = int_to_ptr.vmem [resolvable:$true] %s527
      %s529 = sshll.u32 %s7, 4
      %s530 = int_to_ptr.hbm [resolvable:$true] %s529
      %532 = dma.vmem_to_hbm [thread:$0]  %s528, 16, %s530, [#allocation4]
    $region33: #{tpu_custom_call.1} parent=1 // pred_fallthru
      _
    // Predicated region
    $region34: #{tpu_custom_call.1} parent=1 // pred_check
      _
    $region35: #{tpu_custom_call.1} parent=1 // pred_check_branch
      %534 = sbr.rel (0) target = $region37
    $region36: #{tpu_custom_call.1} parent=1 // pred_region
      %536 = dma.done [#allocation4], 16
    $region37: #{tpu_custom_call.1} parent=1 // pred_fallthru
      _
    %537 = vsyncpa [#allocation4], 1

</llo_original>
